<compile_context>
chip_gen: v7x
topology: tpu7x:2x2x1
jax: 0.10.0
libtpu: 0.0.40
codegen_flags: <defaults>
</compile_context>

<pallas_src>
import jax
import jax.numpy as jnp
from jax.experimental import pallas as pl
from jax.experimental.pallas import tpu as pltpu

_MiB = 1024 * 1024


# --------------------------------------------------------------------------- #
# Kernel
# --------------------------------------------------------------------------- #
def _sqlu_kernel(z_ref, o_ref):
    z = z_ref[...]
    quad = z + (z * z) * 0.25                       # branch for -2 <= z <= 0
    o_ref[...] = jnp.where(z > 0.0, z, jnp.where(z < -2.0, -1.0, quad))


def _sqlu_ref(z):
    # Pure-JAX reference / tiny-tail fallback matching the PyTorch semantics.
    return jnp.where(z > 0.0, z,
                     jnp.where(z < -2.0, jnp.full_like(z, -1.0),
                               z + (z * z) * 0.25))


# --------------------------------------------------------------------------- #
# Helpers
# --------------------------------------------------------------------------- #
def _round_down(x, m):
    return (x // m) * m


def _round_up(x, m):
    return ((x + m - 1) // m) * m


def _tpu_params():
    """Best-effort (physical VMEM bytes, TensorCores per chip). Never raises."""
    vmem = None
    cores = None
    try:
        info = pltpu.get_tpu_info()
        v = getattr(info, "vmem_capacity_bytes", None)
        if v is not None:
            try:
                v = int(v)
                if v > 0:
                    vmem = v
            except Exception:
                pass
        for attr in ("num_cores", "num_tensorcores", "tensor_cores_per_chip",
                     "cores_per_chip", "num_cores_per_chip"):
            c = getattr(info, attr, None)
            if c is None:
                continue
            try:
                c = int(c)
            except Exception:
                continue
            if c > 0:
                cores = c
                break
    except Exception:
        pass
    if vmem is None or cores is None:
        try:
            kind = jax.devices()[0].device_kind.lower()
            if "v7" in kind:
                vmem = vmem or 64 * _MiB
                cores = cores or 2
            elif ("v6" in kind) or ("v5e" in kind) or ("v5 lite" in kind) \
                    or ("v5litepod" in kind):
                vmem = vmem or 128 * _MiB
                cores = cores or 1
        except Exception:
            pass
    return vmem, cores


def _sqlu_2d(x2d: jax.Array) -> jax.Array:
    """Run the SQLU kernel over a lane-dense (rows, W) slab, W % 128 == 0."""
    rows, W = x2d.shape
    dtype = x2d.dtype
    itemsize = jnp.dtype(dtype).itemsize

    vmem_phys, num_cores = _tpu_params()
    if vmem_phys is None:
        vmem_phys = 64 * _MiB                 # conservative: smallest per-TC VMEM (v7x)

    # ~8 MiB blocks on 128-MiB-VMEM chips (v5e/v6e), ~6 MiB on 64-MiB chips (v7x).
    target_block_bytes = 8 * _MiB if vmem_phys >= 96 * _MiB else 6 * _MiB
    min_block_bytes = 2 * _MiB

    # Dtype-aware sublane granularity: 8 rows f32, 16 bf16/f16, 32 int8/fp8.
    sublane = 8 * max(1, 4 // itemsize)
    row_bytes = W * itemsize

    tile_rows = max(sublane, _round_down(target_block_bytes // row_bytes, sublane))

    # Multi-TC chips: prefer >= min_steps grid steps so ("parallel",) can shard
    # the grid across TensorCores -- but never shrink a block below
    # min_block_bytes (per-step overhead tax) to get there.
    if num_cores is None:
        min_steps = 4          # unknown gen: feeds both v7x TCs, ~free on 1-TC chips
    elif num_cores <= 1:
        min_steps = 1          # serial grid on a single TC: extra steps = pure overhead
    else:
        min_steps = 2 * num_cores
    if pl.cdiv(rows, tile_rows) < min_steps:
        floor_rows = max(sublane, _round_down(min_block_bytes // row_bytes, sublane))
        want_rows = max(sublane, _round_up(pl.cdiv(rows, min_steps), sublane))
        tile_rows = min(tile_rows, max(want_rows, floor_rows))

    tile_rows = min(tile_rows, rows)          # == rows means full dim (always legal)

    block_bytes = tile_rows * row_bytes
    # 2 in + 2 out double-buffers + headroom; above the 16/32 MiB scoped
    # defaults, comfortably under physical VMEM on every generation.
    vmem_limit = int(min(48 * _MiB, max(32 * _MiB, 4 * block_bytes + 8 * _MiB)))

    grid = (pl.cdiv(rows, tile_rows),)        # partial last row-block is masked

    return pl.pallas_call(
        _sqlu_kernel,
        out_shape=jax.ShapeDtypeStruct((rows, W), dtype),
        grid_spec=pltpu.PrefetchScalarGridSpec(
            num_scalar_prefetch=0,
            grid=grid,
            in_specs=[pl.BlockSpec((tile_rows, W), lambda i: (i, 0))],
            out_specs=pl.BlockSpec((tile_rows, W), lambda i: (i, 0)),
        ),
        compiler_params=pltpu.CompilerParams(
            dimension_semantics=("parallel",),
            vmem_limit_bytes=vmem_limit),
    )(x2d)


# --------------------------------------------------------------------------- #
# Public wrapper
# --------------------------------------------------------------------------- #
def sqlu(x: jax.Array) -> jax.Array:
    """Elementwise SQLU. Accepts any shape; same shape/dtype out."""
    orig_shape = x.shape
    n = x.size
    if n == 0:
        return x
    x_flat = x.reshape(-1)

    # --- lane-dense last dim W (multiple of 128) that divides n -------------
    W = None
    for cand in (2048, 1024, 512, 256, 128):
        if n % cand == 0:
            W = cand
            break

    if W is not None:
        return _sqlu_2d(x_flat.reshape(n // W, W)).reshape(orig_shape)

    # --- ragged size: kernel on the aligned bulk, jnp on the small tail -----
    # (avoids the old full-tensor jnp.pad + output slice, which tripled HBM
    #  traffic for a purely bandwidth-bound op)
    for cand in (2048, 1024, 512, 256, 128):
        if n >= cand:
            W = cand
            break
    else:
        # Fewer than 128 elements: a kernel launch is not worth it.
        return _sqlu_ref(x)

    n_bulk = _round_down(n, W)
    bulk = _sqlu_2d(x_flat[:n_bulk].reshape(n_bulk // W, W)).reshape(-1)
    tail = _sqlu_ref(x_flat[n_bulk:])
    return jnp.concatenate([bulk, tail]).reshape(orig_shape)


# --------------------------------------------------------------------------- #
# Self-test
# --------------------------------------------------------------------------- #
if __name__ == "__main__":
    key = jax.random.PRNGKey(0)
    k1, k2, k3, k4, k5 = jax.random.split(key, 5)

    # 1) Primary small check: NCHW-ish, n = 2048 -> lane-dense single block.
    x = jax.random.normal(k1, (2, 4, 16, 16), dtype=jnp.float32) * 2.0
    out = sqlu(x)
    jax.block_until_ready(out)
    assert out.shape == x.shape and out.dtype == x.dtype
    assert jnp.allclose(out, _sqlu_ref(x), atol=1e-6, rtol=1e-6)

    # 2) Ragged size with a 128-aligned bulk (kernel) + small tail (jnp).
    x2 = jax.random.normal(k2, (5, 417), dtype=jnp.float32) * 3.0
    out2 = sqlu(x2)
    jax.block_until_ready(out2)
    assert out2.shape == x2.shape and out2.dtype == x2.dtype
    assert jnp.allclose(out2, _sqlu_ref(x2), atol=1e-6, rtol=1e-6)

    # 3) Tiny ragged tensor (< 128 elements): pure-jnp fallback path.
    x3 = jax.random.normal(k3, (3, 5, 7), dtype=jnp.float32) * 3.0
    out3 = sqlu(x3)
    jax.block_until_ready(out3)
    assert out3.shape == x3.shape and out3.dtype == x3.dtype
    assert jnp.allclose(out3, _sqlu_ref(x3), atol=1e-6, rtol=1e-6)

    # 4) Moderate (~4 MiB) tensor: multiple grid steps / masked partial block
    #    on multi-core tilings.
    x4 = jax.random.normal(k4, (2, 4, 360, 360), dtype=jnp.float32) * 2.0
    out4 = sqlu(x4)
    jax.block_until_ready(out4)
    assert jnp.allclose(out4, _sqlu_ref(x4), atol=1e-6, rtol=1e-6)

    # 5) bf16 input: exercises dtype-aware (16-row) sublane rounding.
    x5 = (jax.random.normal(k5, (4, 8, 32, 32), dtype=jnp.float32) * 2.0
          ).astype(jnp.bfloat16)
    out5 = sqlu(x5)
    jax.block_until_ready(out5)
    assert out5.shape == x5.shape and out5.dtype == jnp.bfloat16
    assert jnp.allclose(out5.astype(jnp.float32),
                        _sqlu_ref(x5).astype(jnp.float32), atol=2e-2, rtol=2e-2)

    print("KERNEL_OK")
</pallas_src>

<mosaic_0001>
module attributes {stable_mosaic.version = 11 : i64} {
  func.func @_sqlu_kernel(%arg0: i32, %arg1: memref<1x2048xf32, #tpu.memory_space<vmem>>, %arg2: memref<1x2048xf32, #tpu.memory_space<vmem>>) attributes {dimension_semantics = [#tpu.dimension_semantics<parallel>], iteration_bounds = array<i64: 1>, scalar_prefetch = 0 : i64, scratch_operands = 0 : i64, tpu.core_type = #tpu.core_type<tc>, window_params = [{transform_indices = @transform_0, window_bounds = array<i64: 1, 2048>}, {transform_indices = @transform_1, window_bounds = array<i64: 1, 2048>}]} {
    %c0 = arith.constant 0 : index
    %c0_0 = arith.constant 0 : index
    %0 = vector.load %arg1[%c0, %c0_0] : memref<1x2048xf32, #tpu.memory_space<vmem>>, vector<1x2048xf32>
    %1 = arith.mulf %0, %0 : vector<1x2048xf32>
    %cst = arith.constant 2.500000e-01 : f32
    %2 = vector.broadcast %cst : f32 to vector<1x2048xf32>
    %3 = arith.mulf %1, %2 : vector<1x2048xf32>
    %4 = arith.addf %0, %3 : vector<1x2048xf32>
    %cst_1 = arith.constant 0.000000e+00 : f32
    %5 = vector.broadcast %cst_1 : f32 to vector<1x2048xf32>
    %6 = arith.cmpf ogt, %0, %5 : vector<1x2048xf32>
    %cst_2 = arith.constant -2.000000e+00 : f32
    %7 = vector.broadcast %cst_2 : f32 to vector<1x2048xf32>
    %8 = arith.cmpf olt, %0, %7 : vector<1x2048xf32>
    %cst_3 = arith.constant -1.000000e+00 : f32
    %9 = vector.broadcast %cst_3 : f32 to vector<1x2048xf32>
    %10 = arith.select %8, %9, %4 : vector<1x2048xi1>, vector<1x2048xf32>
    %11 = arith.select %6, %0, %10 : vector<1x2048xi1>, vector<1x2048xf32>
    %c0_4 = arith.constant 0 : index
    %c0_5 = arith.constant 0 : index
    %12 = vector.load %arg2[%c0_4, %c0_5] : memref<1x2048xf32, #tpu.memory_space<vmem>>, vector<1x2048xf32>
    tpu.vector_store %arg2[%c0_4, %c0_5], %11 {strides = array<i32>} : memref<1x2048xf32, #tpu.memory_space<vmem>>, vector<1x2048xf32>,
    return
  }
  func.func @transform_0(%arg0: i32) -> (i32, i32) {
    %c0_i32 = arith.constant 0 : i32
    %c0_i32_0 = arith.constant 0 : i32
    return %arg0, %c0_i32 : i32, i32
  }
  func.func @transform_1(%arg0: i32) -> (i32, i32) {
    %c0_i32 = arith.constant 0 : i32
    %c0_i32_0 = arith.constant 0 : i32
    return %arg0, %c0_i32 : i32, i32
  }
}

</mosaic_0001>

<llo_original>
// kernel: tpu_custom_call.1
$region0: #{tpu_custom_call.1}
  #allocation0 [shape = 'u32[]', space=smem, size = 0x4, offset = 0x4, fixed_abs, tag = 'smem constant byte address 0x4 - core index']
  #allocation1 [shape = 'u32[144,128]{1,0:T(1,128)}', space=vmem, size = 0x12000, scoped, tag = 'internal scratch']
  %s0 = inlined_call_operand.hbm [shape: f32[1,2048], index: 0, kind: input, shape index: {}]
  %s1 = inlined_call_operand.hbm [shape: f32[1,2048], index: 1, kind: output, shape index: {}]
  %s2 = sld [smem:[#allocation0]]
  $region18: #{tpu_custom_call.1} parent=0
    _
  %s4 = ssub.s32 1, %s2
  %s5 = scalar_select 0, %s4, %s2
  $region1: #{tpu_custom_call.1} parent=0
    #allocation2 [shape = 'u8[8192]{0}', space=vmem, size = 0x2000, scoped, tag = 'input window, operand 0, single buffered']
    #allocation3 [shape = 's32[1]{0}', space=sflag, size = 0x4, scoped, tag = 'scoped memory for tpu_custom_call.1']
    #allocation4 [shape = 's32[1]{0}', space=sflag, size = 0x4, scoped, tag = 'scoped memory for tpu_custom_call.1']
    #allocation5 [shape = 'u8[8192]{0}', space=vmem, size = 0x2000, scoped, tag = 'output window, operand 0, single buffered']
    %6 = vsyncpa [#allocation3], 0
    %7 = vsyncpa [#allocation4], 0
    // Predicated region
    $region2: #{tpu_custom_call.1} parent=1 // pred_check
      _
    $region3: #{tpu_custom_call.1} parent=1 // pred_check_branch
      %9 = sbr.rel (0) target = $region5
    $region4: #{tpu_custom_call.1} parent=1 // pred_region
      %s11 = ssub.s32 256, 256
      %12 = vsyncadd [#allocation3], %s11
      %s14 = sshll.u32 [#allocation2], 4
      %s15 = int_to_ptr.vmem [resolvable:$true] %s14
      %17 = dma.hbm_to_vmem [thread:$0]  %s0, 256, %s15, [#allocation3]
    $region5: #{tpu_custom_call.1} parent=1 // pred_fallthru
      _
    // Predicated region
    $region6: #{tpu_custom_call.1} parent=1 // pred_check
      _
    $region7: #{tpu_custom_call.1} parent=1 // pred_check_branch
      %19 = sbr.rel (0) target = $region9
    $region8: #{tpu_custom_call.1} parent=1 // pred_region
      %20 = dma.done [#allocation3], 256
    $region9: #{tpu_custom_call.1} parent=1 // pred_fallthru
      _
    %v21 = vld [vmem:[#allocation2] sm:$0xff]
    %v22 = vld [vmem:[#allocation2 + $0x8] sm:$0xff]
    %v23 = vmul.f32 %v21, %v21
    %v24 = vmul.f32 %v22, %v22
    %v25 = vmul.f32 %v23, 0.25
    %v26 = vmul.f32 %v24, 0.25
    %v27 = vadd.f32 %v21, %v25
    %v28 = vadd.f32 %v22, %v26
    %vm29 = vcmp.gt.f32.partialorder %v21, 0.0
    %vm30 = vcmp.gt.f32.partialorder %v22, 0.0
    %vm31 = vcmp.lt.f32.partialorder %v21, -2.0
    %vm32 = vcmp.lt.f32.partialorder %v22, -2.0
    %v33 = vsel %vm31, -1.0, %v27
    %v34 = vsel %vm32, -1.0, %v28
    %v35 = vsel %vm29, %v21, %v33
    %v36 = vsel %vm30, %v22, %v34
    %37 = vst [vmem:[#allocation5] sm:$0xff] %v35
    %38 = vst [vmem:[#allocation5 + $0x8] sm:$0xff] %v36
    // Predicated region
    $region10: #{tpu_custom_call.1} parent=1 // pred_check
      _
    $region11: #{tpu_custom_call.1} parent=1 // pred_check_branch
      %40 = sbr.rel (0) target = $region13
    $region12: #{tpu_custom_call.1} parent=1 // pred_region
      %s42 = ssub.s32 256, 256
      %43 = vsyncadd [#allocation4], %s42
      %s45 = sshll.u32 [#allocation5], 4
      %s46 = int_to_ptr.vmem [resolvable:$true] %s45
      %48 = dma.vmem_to_hbm [thread:$0]  %s46, 256, %s1, [#allocation4]
    $region13: #{tpu_custom_call.1} parent=1 // pred_fallthru
      _
    // Predicated region
    $region14: #{tpu_custom_call.1} parent=1 // pred_check
      _
    $region15: #{tpu_custom_call.1} parent=1 // pred_check_branch
      %50 = sbr.rel (0) target = $region17
    $region16: #{tpu_custom_call.1} parent=1 // pred_region
      %51 = dma.done [#allocation4], 256
    $region17: #{tpu_custom_call.1} parent=1 // pred_fallthru
      _
    %52 = vsyncpa [#allocation3], 1
    %53 = vsyncpa [#allocation4], 1

</llo_original>
